<compile_context>
chip_gen: v7x
topology: tpu7x:2x2x1
jax: 0.10.0
libtpu: 0.0.40
codegen_flags: <defaults>
</compile_context>

<pallas_src>
import functools

import jax
import jax.numpy as jnp
import numpy as np
from jax.experimental import pallas as pl
from jax.experimental.pallas import tpu as pltpu


def _resblock_kernel(x_ref, w1_ref, g1_ref, be1_ref, w2_ref, g2_ref, be2_ref,
                     o_ref, *, L, n_valid):
    """Single-invocation ResBlock on a lane-dense (Cp, NLp) slab."""
    Cp, NLp = o_ref.shape
    K = w1_ref.shape[0]
    pad = (K - 1) // 2
    eps = 1e-5
    inv_cnt = 1.0 / float(n_valid)          # BN stats over the REAL lane count
    mxu_dtype = x_ref.dtype

    # Lane bookkeeping, computed once from an in-kernel iota (no `pos` input).
    lane = jax.lax.broadcasted_iota(jnp.int32, (1, NLp), 1)
    if NLp > n_valid:
        lane_valid = lane < n_valid                         # real vs pad lanes
        # sentinel position for pad lanes -> every tap is masked out there
        pos = jnp.where(lane_valid, lane % L, -(L + K))
    else:
        lane_valid = None
        pos = lane % L                      # position of each lane in its sample

    # K boundary-validity masks, built once and reused by BOTH convs.
    masks = []
    for k in range(K):
        s = k - pad
        if s == 0:
            masks.append(None)
        else:
            masks.append(jnp.logical_and(pos + s >= 0, pos + s < L))

    def conv(h, w_ref):
        # 'same' Conv1d as K per-tap MXU matmuls accumulated in f32.
        # Conv bias intentionally omitted: training-mode BN cancels it exactly.
        acc = None
        for k in range(K):
            s = k - pad
            if s == 0:
                slab = h
            else:
                # slab[:, p] = h[:, p + s]; wrap-around lanes are masked below.
                # Static-shift jnp.roll lowers to the same lane rotate/concat
                # Mosaic emits for pltpu.roll, and also runs under interpret.
                slab = jnp.roll(h, -s, axis=1)
                slab = jnp.where(masks[k], slab, 0)
            y = jnp.dot(w_ref[k], slab, preferred_element_type=jnp.float32)
            acc = y if acc is None else acc + y
        return acc                                           # (Cp, NLp) f32

    def bn_scale_shift(h, g_ref, be_ref):
        # Training-mode BatchNorm1d: biased batch stats, one pass in f32,
        # folded into a single per-channel scale & shift.
        # TODO(synk): if a v6e bundle profile shows the XLU slot binding,
        # compute these lane reductions as a (Cp,NLp)@(NLp,1) ones-matmul on
        # the otherwise idle MXU instead of jnp.sum.
        s1 = jnp.sum(h, axis=-1, keepdims=True)              # pad lanes are 0
        s2 = jnp.sum(h * h, axis=-1, keepdims=True)
        mean = s1 * inv_cnt
        var = s2 * inv_cnt - mean * mean
        scale = g_ref[...] * jax.lax.rsqrt(var + eps)
        shift = be_ref[...] - mean * scale
        return scale, shift

    h = conv(x_ref[...], w1_ref)                             # conv1 (f32 accum)
    sc, sh = bn_scale_shift(h, g1_ref, be1_ref)
    h = jnp.maximum(h * sc + sh, 0.0)                        # bn1 + relu fused
    if lane_valid is not None:
        h = jnp.where(lane_valid, h, 0.0)                    # keep pad lanes 0

    h = conv(h.astype(mxu_dtype), w2_ref)                    # conv2
    sc, sh = bn_scale_shift(h, g2_ref, be2_ref)
    o_ref[...] = (h * sc + sh).astype(o_ref.dtype)           # one lane-dense store


def resblock_pallas(x, params, kernel_size=5, mxu_dtype=jnp.bfloat16,
                    out_dtype=None):
    """x: (N, C, L).  params: PyTorch-layout parameters.

    mxu_dtype: matmul-operand dtype.  bf16 (default) gives ~2x MXU throughput
    and halves activation DMA/VMEM; pass jnp.float32 for a near-exact match of
    the f32 reference.  Accumulation and BN statistics are always f32.
    out_dtype: output dtype (defaults to x.dtype; pass jnp.bfloat16 to halve
    writeback if downstream tolerates it).
    """
    N, C, L = x.shape
    K = kernel_size
    assert K % 2 == 1, "padding='same' with stride 1 requires odd kernel_size"
    assert params["w1"].shape == (C, C, K) and params["w2"].shape == (C, C, K)
    out_dtype = jnp.dtype(x.dtype) if out_dtype is None else jnp.dtype(out_dtype)

    # ---- layout glue (pure plumbing, no compute) ---------------------------
    itemsize = jnp.dtype(mxu_dtype).itemsize
    sub = 8 * max(1, 4 // itemsize)            # sublane tile: 8 (f32) / 16 (bf16)
    Cp = ((C + sub - 1) // sub) * sub          # channel pad -> aligned sublanes
    NL = N * L
    NLp = ((NL + 127) // 128) * 128            # lane pad -> full vregs, dense vst

    # (N, C, L) -> (Cp, NLp): channels on sublanes, batch*length lane-dense.
    x_flat = jnp.transpose(x, (1, 0, 2)).reshape(C, NL)
    x_flat = jnp.pad(x_flat, ((0, Cp - C), (0, NLp - NL))).astype(mxu_dtype)

    def taps(w):   # PyTorch (Cout, Cin, K) -> tap-major (K, Cp, Cp)
        wt = jnp.transpose(w, (2, 0, 1))
        return jnp.pad(wt, ((0, 0), (0, Cp - C), (0, Cp - C))).astype(mxu_dtype)

    def col(v, fill):   # (C,) -> (Cp, 1) f32 column
        v = jnp.pad(v.astype(jnp.float32), (0, Cp - C), constant_values=fill)
        return v.reshape(Cp, 1)

    # NOTE: conv biases b1/b2 are deliberately not shipped (BN cancels them).
    args = (x_flat,
            taps(params["w1"]), col(params["g1"], 1.0), col(params["be1"], 0.0),
            taps(params["w2"]), col(params["g2"], 1.0), col(params["be2"], 0.0))

    kernel = functools.partial(_resblock_kernel, L=L, n_valid=NL)
    vmem = pl.BlockSpec(memory_space=pltpu.MemorySpace.VMEM)

    # VMEM request sized from the actual dtypes / live set, generation-aware.
    est = Cp * NLp * (3 * itemsize + 4 * 4) + 2 * K * Cp * Cp * itemsize + (1 << 20)
    try:
        ceiling = int(pltpu.get_tpu_info().vmem_capacity_bytes) // 2
    except Exception:   # interpret mode / older jax: conservative fallback
        ceiling = 32 << 20
    vmem_limit = int(min(max(est, 4 << 20), ceiling))

    out_flat = pl.pallas_call(
        kernel,
        out_shape=jax.ShapeDtypeStruct((Cp, NLp), out_dtype),
        in_specs=[vmem] * len(args),
        out_specs=vmem,
        compiler_params=pltpu.CompilerParams(vmem_limit_bytes=vmem_limit),
    )(*args)

    # layout glue back: (Cp, NLp) -> (N, C, L)
    out = out_flat[:C, :NL]
    return jnp.transpose(out.reshape(C, N, L), (1, 0, 2))


def resblock_ref(x, params, kernel_size=5):
    """Pure-JAX reference matching PyTorch semantics (training-mode BN)."""
    pad = (kernel_size - 1) // 2
    eps = 1e-5

    def conv(x, w, b):
        y = jax.lax.conv_general_dilated(
            x, w, window_strides=(1,), padding=[(pad, pad)],
            dimension_numbers=("NCH", "OIH", "NCH"))
        return y + b[None, :, None]

    def bn(x, g, be):
        mean = jnp.mean(x, axis=(0, 2), keepdims=True)
        var = jnp.mean((x - mean) ** 2, axis=(0, 2), keepdims=True)
        return (x - mean) * jax.lax.rsqrt(var + eps) * g[None, :, None] \
            + be[None, :, None]

    h = conv(x, params["w1"], params["b1"])
    h = bn(h, params["g1"], params["be1"])
    h = jnp.maximum(h, 0.0)
    h = conv(h, params["w2"], params["b2"])
    h = bn(h, params["g2"], params["be2"])
    return h


if __name__ == "__main__":
    N, C, L, K = 2, 4, 16, 5

    key = jax.random.PRNGKey(0)
    ks = jax.random.split(key, 9)
    params = {
        "w1": 0.1 * jax.random.normal(ks[0], (C, C, K), jnp.float32),
        "b1": 0.1 * jax.random.normal(ks[1], (C,), jnp.float32),
        "g1": 1.0 + 0.1 * jax.random.normal(ks[2], (C,), jnp.float32),
        "be1": 0.1 * jax.random.normal(ks[3], (C,), jnp.float32),
        "w2": 0.1 * jax.random.normal(ks[4], (C, C, K), jnp.float32),
        "b2": 0.1 * jax.random.normal(ks[5], (C,), jnp.float32),
        "g2": 1.0 + 0.1 * jax.random.normal(ks[6], (C,), jnp.float32),
        "be2": 0.1 * jax.random.normal(ks[7], (C,), jnp.float32),
    }
    x = jax.random.normal(ks[8], (N, C, L), jnp.float32)

    ref = jax.block_until_ready(resblock_ref(x, params, kernel_size=K))

    # f32 MXU operands: near-exact match with the f32 reference.
    out_f32 = jax.block_until_ready(
        resblock_pallas(x, params, kernel_size=K, mxu_dtype=jnp.float32))
    np.testing.assert_allclose(np.asarray(out_f32), np.asarray(ref),
                               rtol=2e-4, atol=2e-4)

    # Default bf16 MXU operands (2x MXU throughput, half activation DMA);
    # tolerance reflects bf16 operand rounding — exactness proven above.
    out_bf16 = jax.block_until_ready(resblock_pallas(x, params, kernel_size=K))
    np.testing.assert_allclose(np.asarray(out_bf16), np.asarray(ref),
                               rtol=5e-2, atol=1e-1)

    print("KERNEL_OK")
</pallas_src>

<mosaic_0001>
module attributes {stable_mosaic.version = 11 : i64} {
  func.func @_resblock_kernel(%arg0: memref<8x128xf32, #tpu.memory_space<vmem>>, %arg1: memref<5x8x8xf32, #tpu.memory_space<vmem>>, %arg2: memref<8x1xf32, #tpu.memory_space<vmem>>, %arg3: memref<8x1xf32, #tpu.memory_space<vmem>>, %arg4: memref<5x8x8xf32, #tpu.memory_space<vmem>>, %arg5: memref<8x1xf32, #tpu.memory_space<vmem>>, %arg6: memref<8x1xf32, #tpu.memory_space<vmem>>, %arg7: memref<8x128xf32, #tpu.memory_space<vmem>>) attributes {dimension_semantics = [], scalar_prefetch = 0 : i64, scratch_operands = 0 : i64, tpu.core_type = #tpu.core_type<tc>} {
    %0 = tpu.iota {dimensions = array<i32: 1>} : vector<1x128xi32>
    %c32_i32 = arith.constant 32 : i32
    %1 = vector.broadcast %c32_i32 : i32 to vector<1x128xi32>
    %2 = arith.cmpi slt, %0, %1 : vector<1x128xi32>
    %c16_i32 = arith.constant 16 : i32
    %c0_i32 = arith.constant 0 : i32
    %3 = arith.cmpi eq, %c16_i32, %c0_i32 : i32
    %c1_i32 = arith.constant 1 : i32
    %4 = arith.select %3, %c1_i32, %c16_i32 : i32
    %5 = vector.broadcast %4 : i32 to vector<1x128xi32>
    %6 = arith.remsi %0, %5 : vector<1x128xi32>
    %c0_i32_0 = arith.constant 0 : i32
    %7 = vector.broadcast %c0_i32_0 : i32 to vector<1x128xi32>
    %8 = arith.cmpi ne, %6, %7 : vector<1x128xi32>
    %c0_i32_1 = arith.constant 0 : i32
    %9 = vector.broadcast %c0_i32_1 : i32 to vector<1x128xi32>
    %10 = arith.cmpi slt, %6, %9 : vector<1x128xi32>
    %c0_i32_2 = arith.constant 0 : i32
    %11 = arith.cmpi slt, %4, %c0_i32_2 : i32
    %12 = vector.broadcast %11 : i1 to vector<1x128xi1>
    %13 = vector.broadcast %12 : vector<1x128xi1> to vector<1x128xi1>
    %14 = arith.xori %10, %13 : vector<1x128xi1>
    %15 = arith.andi %14, %8 : vector<1x128xi1>
    %16 = vector.broadcast %4 : i32 to vector<1x128xi32>
    %17 = arith.addi %6, %16 : vector<1x128xi32>
    %18 = arith.select %15, %17, %6 : vector<1x128xi1>, vector<1x128xi32>
    %c-21_i32 = arith.constant -21 : i32
    %19 = vector.broadcast %c-21_i32 : i32 to vector<1x128xi32>
    %20 = arith.select %2, %18, %19 : vector<1x128xi1>, vector<1x128xi32>
    %c-2_i32 = arith.constant -2 : i32
    %21 = vector.broadcast %c-2_i32 : i32 to vector<1x128xi32>
    %22 = arith.addi %20, %21 : vector<1x128xi32>
    %c0_i32_3 = arith.constant 0 : i32
    %23 = vector.broadcast %c0_i32_3 : i32 to vector<1x128xi32>
    %24 = arith.cmpi sge, %22, %23 : vector<1x128xi32>
    %c-2_i32_4 = arith.constant -2 : i32
    %25 = vector.broadcast %c-2_i32_4 : i32 to vector<1x128xi32>
    %26 = arith.addi %20, %25 : vector<1x128xi32>
    %c16_i32_5 = arith.constant 16 : i32
    %27 = vector.broadcast %c16_i32_5 : i32 to vector<1x128xi32>
    %28 = arith.cmpi slt, %26, %27 : vector<1x128xi32>
    %29 = arith.andi %24, %28 : vector<1x128xi1>
    %c-1_i32 = arith.constant -1 : i32
    %30 = vector.broadcast %c-1_i32 : i32 to vector<1x128xi32>
    %31 = arith.addi %20, %30 : vector<1x128xi32>
    %c0_i32_6 = arith.constant 0 : i32
    %32 = vector.broadcast %c0_i32_6 : i32 to vector<1x128xi32>
    %33 = arith.cmpi sge, %31, %32 : vector<1x128xi32>
    %c-1_i32_7 = arith.constant -1 : i32
    %34 = vector.broadcast %c-1_i32_7 : i32 to vector<1x128xi32>
    %35 = arith.addi %20, %34 : vector<1x128xi32>
    %c16_i32_8 = arith.constant 16 : i32
    %36 = vector.broadcast %c16_i32_8 : i32 to vector<1x128xi32>
    %37 = arith.cmpi slt, %35, %36 : vector<1x128xi32>
    %38 = arith.andi %33, %37 : vector<1x128xi1>
    %c1_i32_9 = arith.constant 1 : i32
    %39 = vector.broadcast %c1_i32_9 : i32 to vector<1x128xi32>
    %40 = arith.addi %20, %39 : vector<1x128xi32>
    %c0_i32_10 = arith.constant 0 : i32
    %41 = vector.broadcast %c0_i32_10 : i32 to vector<1x128xi32>
    %42 = arith.cmpi sge, %40, %41 : vector<1x128xi32>
    %c1_i32_11 = arith.constant 1 : i32
    %43 = vector.broadcast %c1_i32_11 : i32 to vector<1x128xi32>
    %44 = arith.addi %20, %43 : vector<1x128xi32>
    %c16_i32_12 = arith.constant 16 : i32
    %45 = vector.broadcast %c16_i32_12 : i32 to vector<1x128xi32>
    %46 = arith.cmpi slt, %44, %45 : vector<1x128xi32>
    %47 = arith.andi %42, %46 : vector<1x128xi1>
    %c2_i32 = arith.constant 2 : i32
    %48 = vector.broadcast %c2_i32 : i32 to vector<1x128xi32>
    %49 = arith.addi %20, %48 : vector<1x128xi32>
    %c0_i32_13 = arith.constant 0 : i32
    %50 = vector.broadcast %c0_i32_13 : i32 to vector<1x128xi32>
    %51 = arith.cmpi sge, %49, %50 : vector<1x128xi32>
    %c2_i32_14 = arith.constant 2 : i32
    %52 = vector.broadcast %c2_i32_14 : i32 to vector<1x128xi32>
    %53 = arith.addi %20, %52 : vector<1x128xi32>
    %c16_i32_15 = arith.constant 16 : i32
    %54 = vector.broadcast %c16_i32_15 : i32 to vector<1x128xi32>
    %55 = arith.cmpi slt, %53, %54 : vector<1x128xi32>
    %56 = arith.andi %51, %55 : vector<1x128xi1>
    %c0 = arith.constant 0 : index
    %c0_16 = arith.constant 0 : index
    %57 = vector.load %arg0[%c0, %c0_16] : memref<8x128xf32, #tpu.memory_space<vmem>>, vector<8x128xf32>
    %58 = vector.extract_strided_slice %57 {offsets = [0, 126], sizes = [8, 2], strides = [1, 1]} : vector<8x128xf32> to vector<8x2xf32>
    %59 = vector.extract_strided_slice %57 {offsets = [0, 0], sizes = [8, 126], strides = [1, 1]} : vector<8x128xf32> to vector<8x126xf32>
    %60 = tpu.concatenate %58, %59 in 1 : vector<8x2xf32>, vector<8x126xf32> -> vector<8x128xf32>
    %c0_i32_17 = arith.constant 0 : i32
    %61 = arith.sitofp %c0_i32_17 : i32 to f32
    %62 = vector.shape_cast %29 : vector<1x128xi1> to vector<1x128xi1>
    %63 = vector.broadcast %62 : vector<1x128xi1> to vector<8x128xi1>
    %64 = vector.broadcast %61 : f32 to vector<8x128xf32>
    %65 = arith.select %63, %60, %64 : vector<8x128xi1>, vector<8x128xf32>
    %c0_18 = arith.constant 0 : index
    %c0_19 = arith.constant 0 : index
    %c0_20 = arith.constant 0 : index
    %66 = vector.load %arg1[%c0_18, %c0_19, %c0_20] : memref<5x8x8xf32, #tpu.memory_space<vmem>>, vector<1x8x8xf32>
    %67 = vector.shape_cast %66 : vector<1x8x8xf32> to vector<8x8xf32>
    %cst = arith.constant dense<0.000000e+00> : vector<8x128xf32>
    %68 = tpu.matmul %67, %65, %cst {dimension_numbers = #tpu.dot_dimension_numbers<[1], [0], [0], [1], [0, 0, 1, 1], [], []>} : vector<8x8xf32>, vector<8x128xf32>, vector<8x128xf32> -> vector<8x128xf32>
    %69 = vector.extract_strided_slice %57 {offsets = [0, 127], sizes = [8, 1], strides = [1, 1]} : vector<8x128xf32> to vector<8x1xf32>
    %70 = vector.extract_strided_slice %57 {offsets = [0, 0], sizes = [8, 127], strides = [1, 1]} : vector<8x128xf32> to vector<8x127xf32>
    %71 = tpu.concatenate %69, %70 in 1 : vector<8x1xf32>, vector<8x127xf32> -> vector<8x128xf32>
    %c0_i32_21 = arith.constant 0 : i32
    %72 = arith.sitofp %c0_i32_21 : i32 to f32
    %73 = vector.shape_cast %38 : vector<1x128xi1> to vector<1x128xi1>
    %74 = vector.broadcast %73 : vector<1x128xi1> to vector<8x128xi1>
    %75 = vector.broadcast %72 : f32 to vector<8x128xf32>
    %76 = arith.select %74, %71, %75 : vector<8x128xi1>, vector<8x128xf32>
    %c1 = arith.constant 1 : index
    %c0_22 = arith.constant 0 : index
    %c0_23 = arith.constant 0 : index
    %77 = vector.load %arg1[%c1, %c0_22, %c0_23] : memref<5x8x8xf32, #tpu.memory_space<vmem>>, vector<1x8x8xf32>
    %78 = vector.shape_cast %77 : vector<1x8x8xf32> to vector<8x8xf32>
    %cst_24 = arith.constant dense<0.000000e+00> : vector<8x128xf32>
    %79 = tpu.matmul %78, %76, %cst_24 {dimension_numbers = #tpu.dot_dimension_numbers<[1], [0], [0], [1], [0, 0, 1, 1], [], []>} : vector<8x8xf32>, vector<8x128xf32>, vector<8x128xf32> -> vector<8x128xf32>
    %80 = arith.addf %68, %79 : vector<8x128xf32>
    %c2 = arith.constant 2 : index
    %c0_25 = arith.constant 0 : index
    %c0_26 = arith.constant 0 : index
    %81 = vector.load %arg1[%c2, %c0_25, %c0_26] : memref<5x8x8xf32, #tpu.memory_space<vmem>>, vector<1x8x8xf32>
    %82 = vector.shape_cast %81 : vector<1x8x8xf32> to vector<8x8xf32>
    %cst_27 = arith.constant dense<0.000000e+00> : vector<8x128xf32>
    %83 = tpu.matmul %82, %57, %cst_27 {dimension_numbers = #tpu.dot_dimension_numbers<[1], [0], [0], [1], [0, 0, 1, 1], [], []>} : vector<8x8xf32>, vector<8x128xf32>, vector<8x128xf32> -> vector<8x128xf32>
    %84 = arith.addf %80, %83 : vector<8x128xf32>
    %85 = vector.extract_strided_slice %57 {offsets = [0, 1], sizes = [8, 127], strides = [1, 1]} : vector<8x128xf32> to vector<8x127xf32>
    %86 = vector.extract_strided_slice %57 {offsets = [0, 0], sizes = [8, 1], strides = [1, 1]} : vector<8x128xf32> to vector<8x1xf32>
    %87 = tpu.concatenate %85, %86 in 1 : vector<8x127xf32>, vector<8x1xf32> -> vector<8x128xf32>
    %c0_i32_28 = arith.constant 0 : i32
    %88 = arith.sitofp %c0_i32_28 : i32 to f32
    %89 = vector.shape_cast %47 : vector<1x128xi1> to vector<1x128xi1>
    %90 = vector.broadcast %89 : vector<1x128xi1> to vector<8x128xi1>
    %91 = vector.broadcast %88 : f32 to vector<8x128xf32>
    %92 = arith.select %90, %87, %91 : vector<8x128xi1>, vector<8x128xf32>
    %c3 = arith.constant 3 : index
    %c0_29 = arith.constant 0 : index
    %c0_30 = arith.constant 0 : index
    %93 = vector.load %arg1[%c3, %c0_29, %c0_30] : memref<5x8x8xf32, #tpu.memory_space<vmem>>, vector<1x8x8xf32>
    %94 = vector.shape_cast %93 : vector<1x8x8xf32> to vector<8x8xf32>
    %cst_31 = arith.constant dense<0.000000e+00> : vector<8x128xf32>
    %95 = tpu.matmul %94, %92, %cst_31 {dimension_numbers = #tpu.dot_dimension_numbers<[1], [0], [0], [1], [0, 0, 1, 1], [], []>} : vector<8x8xf32>, vector<8x128xf32>, vector<8x128xf32> -> vector<8x128xf32>
    %96 = arith.addf %84, %95 : vector<8x128xf32>
    %97 = vector.extract_strided_slice %57 {offsets = [0, 2], sizes = [8, 126], strides = [1, 1]} : vector<8x128xf32> to vector<8x126xf32>
    %98 = vector.extract_strided_slice %57 {offsets = [0, 0], sizes = [8, 2], strides = [1, 1]} : vector<8x128xf32> to vector<8x2xf32>
    %99 = tpu.concatenate %97, %98 in 1 : vector<8x126xf32>, vector<8x2xf32> -> vector<8x128xf32>
    %c0_i32_32 = arith.constant 0 : i32
    %100 = arith.sitofp %c0_i32_32 : i32 to f32
    %101 = vector.shape_cast %56 : vector<1x128xi1> to vector<1x128xi1>
    %102 = vector.broadcast %101 : vector<1x128xi1> to vector<8x128xi1>
    %103 = vector.broadcast %100 : f32 to vector<8x128xf32>
    %104 = arith.select %102, %99, %103 : vector<8x128xi1>, vector<8x128xf32>
    %c4 = arith.constant 4 : index
    %c0_33 = arith.constant 0 : index
    %c0_34 = arith.constant 0 : index
    %105 = vector.load %arg1[%c4, %c0_33, %c0_34] : memref<5x8x8xf32, #tpu.memory_space<vmem>>, vector<1x8x8xf32>
    %106 = vector.shape_cast %105 : vector<1x8x8xf32> to vector<8x8xf32>
    %cst_35 = arith.constant dense<0.000000e+00> : vector<8x128xf32>
    %107 = tpu.matmul %106, %104, %cst_35 {dimension_numbers = #tpu.dot_dimension_numbers<[1], [0], [0], [1], [0, 0, 1, 1], [], []>} : vector<8x8xf32>, vector<8x128xf32>, vector<8x128xf32> -> vector<8x128xf32>
    %108 = arith.addf %96, %107 : vector<8x128xf32>
    %cst_36 = arith.constant dense<0.000000e+00> : vector<8xf32>
    %109 = vector.multi_reduction <add>, %108, %cst_36 [1] : vector<8x128xf32> to vector<8xf32>
    %110 = vector.shape_cast %109 : vector<8xf32> to vector<8x1xf32>
    %111 = arith.mulf %108, %108 : vector<8x128xf32>
    %cst_37 = arith.constant dense<0.000000e+00> : vector<8xf32>
    %112 = vector.multi_reduction <add>, %111, %cst_37 [1] : vector<8x128xf32> to vector<8xf32>
    %113 = vector.shape_cast %112 : vector<8xf32> to vector<8x1xf32>
    %cst_38 = arith.constant 3.125000e-02 : f32
    %114 = vector.broadcast %cst_38 : f32 to vector<8x1xf32>
    %115 = arith.mulf %110, %114 : vector<8x1xf32>
    %cst_39 = arith.constant 3.125000e-02 : f32
    %116 = vector.broadcast %cst_39 : f32 to vector<8x1xf32>
    %117 = arith.mulf %113, %116 : vector<8x1xf32>
    %118 = arith.mulf %115, %115 : vector<8x1xf32>
    %119 = arith.subf %117, %118 : vector<8x1xf32>
    %c0_40 = arith.constant 0 : index
    %c0_41 = arith.constant 0 : index
    %120 = vector.load %arg2[%c0_40, %c0_41] : memref<8x1xf32, #tpu.memory_space<vmem>>, vector<8x1xf32>
    %cst_42 = arith.constant 9.99999974E-6 : f32
    %121 = vector.broadcast %cst_42 : f32 to vector<8x1xf32>
    %122 = arith.addf %119, %121 : vector<8x1xf32>
    %123 = math.rsqrt %122 : vector<8x1xf32>
    %124 = arith.mulf %120, %123 : vector<8x1xf32>
    %c0_43 = arith.constant 0 : index
    %c0_44 = arith.constant 0 : index
    %125 = vector.load %arg3[%c0_43, %c0_44] : memref<8x1xf32, #tpu.memory_space<vmem>>, vector<8x1xf32>
    %126 = arith.mulf %115, %124 : vector<8x1xf32>
    %127 = arith.subf %125, %126 : vector<8x1xf32>
    %128 = vector.broadcast %124 : vector<8x1xf32> to vector<8x128xf32>
    %129 = arith.mulf %108, %128 : vector<8x128xf32>
    %130 = vector.broadcast %127 : vector<8x1xf32> to vector<8x128xf32>
    %131 = arith.addf %129, %130 : vector<8x128xf32>
    %cst_45 = arith.constant 0.000000e+00 : f32
    %132 = vector.broadcast %cst_45 : f32 to vector<8x128xf32>
    %133 = arith.maximumf %131, %132 : vector<8x128xf32>
    %cst_46 = arith.constant 0.000000e+00 : f32
    %134 = vector.shape_cast %2 : vector<1x128xi1> to vector<1x128xi1>
    %135 = vector.broadcast %134 : vector<1x128xi1> to vector<8x128xi1>
    %136 = vector.broadcast %cst_46 : f32 to vector<8x128xf32>
    %137 = arith.select %135, %133, %136 : vector<8x128xi1>, vector<8x128xf32>
    %138 = vector.extract_strided_slice %137 {offsets = [0, 126], sizes = [8, 2], strides = [1, 1]} : vector<8x128xf32> to vector<8x2xf32>
    %139 = vector.extract_strided_slice %137 {offsets = [0, 0], sizes = [8, 126], strides = [1, 1]} : vector<8x128xf32> to vector<8x126xf32>
    %140 = tpu.concatenate %138, %139 in 1 : vector<8x2xf32>, vector<8x126xf32> -> vector<8x128xf32>
    %c0_i32_47 = arith.constant 0 : i32
    %141 = arith.sitofp %c0_i32_47 : i32 to f32
    %142 = vector.shape_cast %29 : vector<1x128xi1> to vector<1x128xi1>
    %143 = vector.broadcast %142 : vector<1x128xi1> to vector<8x128xi1>
    %144 = vector.broadcast %141 : f32 to vector<8x128xf32>
    %145 = arith.select %143, %140, %144 : vector<8x128xi1>, vector<8x128xf32>
    %c0_48 = arith.constant 0 : index
    %c0_49 = arith.constant 0 : index
    %c0_50 = arith.constant 0 : index
    %146 = vector.load %arg4[%c0_48, %c0_49, %c0_50] : memref<5x8x8xf32, #tpu.memory_space<vmem>>, vector<1x8x8xf32>
    %147 = vector.shape_cast %146 : vector<1x8x8xf32> to vector<8x8xf32>
    %cst_51 = arith.constant dense<0.000000e+00> : vector<8x128xf32>
    %148 = tpu.matmul %147, %145, %cst_51 {dimension_numbers = #tpu.dot_dimension_numbers<[1], [0], [0], [1], [0, 0, 1, 1], [], []>} : vector<8x8xf32>, vector<8x128xf32>, vector<8x128xf32> -> vector<8x128xf32>
    %149 = vector.extract_strided_slice %137 {offsets = [0, 127], sizes = [8, 1], strides = [1, 1]} : vector<8x128xf32> to vector<8x1xf32>
    %150 = vector.extract_strided_slice %137 {offsets = [0, 0], sizes = [8, 127], strides = [1, 1]} : vector<8x128xf32> to vector<8x127xf32>
    %151 = tpu.concatenate %149, %150 in 1 : vector<8x1xf32>, vector<8x127xf32> -> vector<8x128xf32>
    %c0_i32_52 = arith.constant 0 : i32
    %152 = arith.sitofp %c0_i32_52 : i32 to f32
    %153 = vector.shape_cast %38 : vector<1x128xi1> to vector<1x128xi1>
    %154 = vector.broadcast %153 : vector<1x128xi1> to vector<8x128xi1>
    %155 = vector.broadcast %152 : f32 to vector<8x128xf32>
    %156 = arith.select %154, %151, %155 : vector<8x128xi1>, vector<8x128xf32>
    %c1_53 = arith.constant 1 : index
    %c0_54 = arith.constant 0 : index
    %c0_55 = arith.constant 0 : index
    %157 = vector.load %arg4[%c1_53, %c0_54, %c0_55] : memref<5x8x8xf32, #tpu.memory_space<vmem>>, vector<1x8x8xf32>
    %158 = vector.shape_cast %157 : vector<1x8x8xf32> to vector<8x8xf32>
    %cst_56 = arith.constant dense<0.000000e+00> : vector<8x128xf32>
    %159 = tpu.matmul %158, %156, %cst_56 {dimension_numbers = #tpu.dot_dimension_numbers<[1], [0], [0], [1], [0, 0, 1, 1], [], []>} : vector<8x8xf32>, vector<8x128xf32>, vector<8x128xf32> -> vector<8x128xf32>
    %160 = arith.addf %148, %159 : vector<8x128xf32>
    %c2_57 = arith.constant 2 : index
    %c0_58 = arith.constant 0 : index
    %c0_59 = arith.constant 0 : index
    %161 = vector.load %arg4[%c2_57, %c0_58, %c0_59] : memref<5x8x8xf32, #tpu.memory_space<vmem>>, vector<1x8x8xf32>
    %162 = vector.shape_cast %161 : vector<1x8x8xf32> to vector<8x8xf32>
    %cst_60 = arith.constant dense<0.000000e+00> : vector<8x128xf32>
    %163 = tpu.matmul %162, %137, %cst_60 {dimension_numbers = #tpu.dot_dimension_numbers<[1], [0], [0], [1], [0, 0, 1, 1], [], []>} : vector<8x8xf32>, vector<8x128xf32>, vector<8x128xf32> -> vector<8x128xf32>
    %164 = arith.addf %160, %163 : vector<8x128xf32>
    %165 = vector.extract_strided_slice %137 {offsets = [0, 1], sizes = [8, 127], strides = [1, 1]} : vector<8x128xf32> to vector<8x127xf32>
    %166 = vector.extract_strided_slice %137 {offsets = [0, 0], sizes = [8, 1], strides = [1, 1]} : vector<8x128xf32> to vector<8x1xf32>
    %167 = tpu.concatenate %165, %166 in 1 : vector<8x127xf32>, vector<8x1xf32> -> vector<8x128xf32>
    %c0_i32_61 = arith.constant 0 : i32
    %168 = arith.sitofp %c0_i32_61 : i32 to f32
    %169 = vector.shape_cast %47 : vector<1x128xi1> to vector<1x128xi1>
    %170 = vector.broadcast %169 : vector<1x128xi1> to vector<8x128xi1>
    %171 = vector.broadcast %168 : f32 to vector<8x128xf32>
    %172 = arith.select %170, %167, %171 : vector<8x128xi1>, vector<8x128xf32>
    %c3_62 = arith.constant 3 : index
    %c0_63 = arith.constant 0 : index
    %c0_64 = arith.constant 0 : index
    %173 = vector.load %arg4[%c3_62, %c0_63, %c0_64] : memref<5x8x8xf32, #tpu.memory_space<vmem>>, vector<1x8x8xf32>
    %174 = vector.shape_cast %173 : vector<1x8x8xf32> to vector<8x8xf32>
    %cst_65 = arith.constant dense<0.000000e+00> : vector<8x128xf32>
    %175 = tpu.matmul %174, %172, %cst_65 {dimension_numbers = #tpu.dot_dimension_numbers<[1], [0], [0], [1], [0, 0, 1, 1], [], []>} : vector<8x8xf32>, vector<8x128xf32>, vector<8x128xf32> -> vector<8x128xf32>
    %176 = arith.addf %164, %175 : vector<8x128xf32>
    %177 = vector.extract_strided_slice %137 {offsets = [0, 2], sizes = [8, 126], strides = [1, 1]} : vector<8x128xf32> to vector<8x126xf32>
    %178 = vector.extract_strided_slice %137 {offsets = [0, 0], sizes = [8, 2], strides = [1, 1]} : vector<8x128xf32> to vector<8x2xf32>
    %179 = tpu.concatenate %177, %178 in 1 : vector<8x126xf32>, vector<8x2xf32> -> vector<8x128xf32>
    %c0_i32_66 = arith.constant 0 : i32
    %180 = arith.sitofp %c0_i32_66 : i32 to f32
    %181 = vector.shape_cast %56 : vector<1x128xi1> to vector<1x128xi1>
    %182 = vector.broadcast %181 : vector<1x128xi1> to vector<8x128xi1>
    %183 = vector.broadcast %180 : f32 to vector<8x128xf32>
    %184 = arith.select %182, %179, %183 : vector<8x128xi1>, vector<8x128xf32>
    %c4_67 = arith.constant 4 : index
    %c0_68 = arith.constant 0 : index
    %c0_69 = arith.constant 0 : index
    %185 = vector.load %arg4[%c4_67, %c0_68, %c0_69] : memref<5x8x8xf32, #tpu.memory_space<vmem>>, vector<1x8x8xf32>
    %186 = vector.shape_cast %185 : vector<1x8x8xf32> to vector<8x8xf32>
    %cst_70 = arith.constant dense<0.000000e+00> : vector<8x128xf32>
    %187 = tpu.matmul %186, %184, %cst_70 {dimension_numbers = #tpu.dot_dimension_numbers<[1], [0], [0], [1], [0, 0, 1, 1], [], []>} : vector<8x8xf32>, vector<8x128xf32>, vector<8x128xf32> -> vector<8x128xf32>
    %188 = arith.addf %176, %187 : vector<8x128xf32>
    %cst_71 = arith.constant dense<0.000000e+00> : vector<8xf32>
    %189 = vector.multi_reduction <add>, %188, %cst_71 [1] : vector<8x128xf32> to vector<8xf32>
    %190 = vector.shape_cast %189 : vector<8xf32> to vector<8x1xf32>
    %191 = arith.mulf %188, %188 : vector<8x128xf32>
    %cst_72 = arith.constant dense<0.000000e+00> : vector<8xf32>
    %192 = vector.multi_reduction <add>, %191, %cst_72 [1] : vector<8x128xf32> to vector<8xf32>
    %193 = vector.shape_cast %192 : vector<8xf32> to vector<8x1xf32>
    %cst_73 = arith.constant 3.125000e-02 : f32
    %194 = vector.broadcast %cst_73 : f32 to vector<8x1xf32>
    %195 = arith.mulf %190, %194 : vector<8x1xf32>
    %cst_74 = arith.constant 3.125000e-02 : f32
    %196 = vector.broadcast %cst_74 : f32 to vector<8x1xf32>
    %197 = arith.mulf %193, %196 : vector<8x1xf32>
    %198 = arith.mulf %195, %195 : vector<8x1xf32>
    %199 = arith.subf %197, %198 : vector<8x1xf32>
    %c0_75 = arith.constant 0 : index
    %c0_76 = arith.constant 0 : index
    %200 = vector.load %arg5[%c0_75, %c0_76] : memref<8x1xf32, #tpu.memory_space<vmem>>, vector<8x1xf32>
    %cst_77 = arith.constant 9.99999974E-6 : f32
    %201 = vector.broadcast %cst_77 : f32 to vector<8x1xf32>
    %202 = arith.addf %199, %201 : vector<8x1xf32>
    %203 = math.rsqrt %202 : vector<8x1xf32>
    %204 = arith.mulf %200, %203 : vector<8x1xf32>
    %c0_78 = arith.constant 0 : index
    %c0_79 = arith.constant 0 : index
    %205 = vector.load %arg6[%c0_78, %c0_79] : memref<8x1xf32, #tpu.memory_space<vmem>>, vector<8x1xf32>
    %206 = arith.mulf %195, %204 : vector<8x1xf32>
    %207 = arith.subf %205, %206 : vector<8x1xf32>
    %208 = vector.broadcast %204 : vector<8x1xf32> to vector<8x128xf32>
    %209 = arith.mulf %188, %208 : vector<8x128xf32>
    %210 = vector.broadcast %207 : vector<8x1xf32> to vector<8x128xf32>
    %211 = arith.addf %209, %210 : vector<8x128xf32>
    %c0_80 = arith.constant 0 : index
    %c0_81 = arith.constant 0 : index
    %212 = vector.load %arg7[%c0_80, %c0_81] : memref<8x128xf32, #tpu.memory_space<vmem>>, vector<8x128xf32>
    tpu.vector_store %arg7[%c0_80, %c0_81], %211 {strides = array<i32>} : memref<8x128xf32, #tpu.memory_space<vmem>>, vector<8x128xf32>,
    return
  }
}

</mosaic_0001>

<llo_original>
// kernel: tpu_custom_call.1
$region0: #{tpu_custom_call.1}
  #allocation0 [shape = 'u32[]', space=smem, size = 0x4, offset = 0x4, fixed_abs, tag = 'smem constant byte address 0x4 - core index']
  #allocation1 [shape = 'u32[144,128]{1,0:T(1,128)}', space=vmem, size = 0x12000, scoped, tag = 'internal scratch']
  %s0 = inlined_call_operand.vmem [shape: f32[8,128], index: 0, kind: input, shape index: {}]
  %s1 = inlined_call_operand.hbm [shape: f32[5,8,8], index: 1, kind: input, shape index: {}]
  %s2 = inlined_call_operand.vmem [shape: f32[8,1], index: 2, kind: input, shape index: {}]
  %s3 = inlined_call_operand.vmem [shape: f32[8,1], index: 3, kind: input, shape index: {}]
  %s4 = inlined_call_operand.vmem [shape: f32[5,8,8], index: 4, kind: input, shape index: {}]
  %s5 = inlined_call_operand.vmem [shape: f32[8,1], index: 5, kind: input, shape index: {}]
  %s6 = inlined_call_operand.vmem [shape: f32[8,1], index: 6, kind: input, shape index: {}]
  %s7 = inlined_call_operand.hbm [shape: f32[8,128], index: 7, kind: output, shape index: {}]
  %s8 = sld [smem:[#allocation0]]
  $region42: #{tpu_custom_call.1} parent=0
    _
  %s10 = ssub.s32 1, %s8
  %s11 = scalar_select 0, %s10, %s8
  $region1: #{tpu_custom_call.1} parent=0
    #allocation2 [shape = 'u8[20480]{0}', space=vmem, size = 0x5000, scoped, tag = 'input window, operand 1, single buffered']
    #allocation3 [shape = 's32[1]{0}', space=sflag, size = 0x4, scoped, tag = 'scoped memory for tpu_custom_call.1']
    #allocation4 [shape = 's32[1]{0}', space=sflag, size = 0x4, scoped, tag = 'scoped memory for tpu_custom_call.1']
    #allocation5 [shape = 'u8[4096]{0}', space=vmem, size = 0x1000, scoped, tag = 'output window, operand 0, single buffered']
    %12 = vsyncpa [#allocation3], 0
    %13 = vsyncpa [#allocation4], 0
    // Predicated region
    $region2: #{tpu_custom_call.1} parent=1 // pred_check
      _
    $region3: #{tpu_custom_call.1} parent=1 // pred_check_branch
      %15 = sbr.rel (0) target = $region5
    $region4: #{tpu_custom_call.1} parent=1 // pred_region
      _
    $region5: #{tpu_custom_call.1} parent=1 // pred_fallthru
      _
    // Predicated region
    $region6: #{tpu_custom_call.1} parent=1 // pred_check
      _
    $region7: #{tpu_custom_call.1} parent=1 // pred_check_branch
      %17 = sbr.rel (0) target = $region9
    $region8: #{tpu_custom_call.1} parent=1 // pred_region
      %s19 = ssub.s32 640, 640
      %20 = vsyncadd [#allocation3], %s19
      %s21 = sshll.u32 [#allocation2], 4
      %s22 = int_to_ptr.vmem [resolvable:$true] %s21
      %27 = dma.hbm_to_vmem [thread:$0]  %s1, 640, %s22, [#allocation3], 128, 128, 8
    $region9: #{tpu_custom_call.1} parent=1 // pred_fallthru
      _
    // Predicated region
    $region10: #{tpu_custom_call.1} parent=1 // pred_check
      _
    $region11: #{tpu_custom_call.1} parent=1 // pred_check_branch
      %29 = sbr.rel (0) target = $region13
    $region12: #{tpu_custom_call.1} parent=1 // pred_region
      _
    $region13: #{tpu_custom_call.1} parent=1 // pred_fallthru
      _
    // Predicated region
    $region14: #{tpu_custom_call.1} parent=1 // pred_check
      _
    $region15: #{tpu_custom_call.1} parent=1 // pred_check_branch
      %31 = sbr.rel (0) target = $region17
    $region16: #{tpu_custom_call.1} parent=1 // pred_region
      _
    $region17: #{tpu_custom_call.1} parent=1 // pred_fallthru
      _
    // Predicated region
    $region18: #{tpu_custom_call.1} parent=1 // pred_check
      _
    $region19: #{tpu_custom_call.1} parent=1 // pred_check_branch
      %33 = sbr.rel (0) target = $region21
    $region20: #{tpu_custom_call.1} parent=1 // pred_region
      _
    $region21: #{tpu_custom_call.1} parent=1 // pred_fallthru
      _
    // Predicated region
    $region22: #{tpu_custom_call.1} parent=1 // pred_check
      _
    $region23: #{tpu_custom_call.1} parent=1 // pred_check_branch
      %35 = sbr.rel (0) target = $region25
    $region24: #{tpu_custom_call.1} parent=1 // pred_region
      _
    $region25: #{tpu_custom_call.1} parent=1 // pred_fallthru
      _
    // Predicated region
    $region26: #{tpu_custom_call.1} parent=1 // pred_check
      _
    $region27: #{tpu_custom_call.1} parent=1 // pred_check_branch
      %37 = sbr.rel (0) target = $region29
    $region28: #{tpu_custom_call.1} parent=1 // pred_region
      _
    $region29: #{tpu_custom_call.1} parent=1 // pred_fallthru
      _
    // Predicated region
    $region30: #{tpu_custom_call.1} parent=1 // pred_check
      _
    $region31: #{tpu_custom_call.1} parent=1 // pred_check_branch
      %39 = sbr.rel (0) target = $region33
    $region32: #{tpu_custom_call.1} parent=1 // pred_region
      %40 = dma.done [#allocation3], 640
    $region33: #{tpu_custom_call.1} parent=1 // pred_fallthru
      _
    %v41 = vlaneseq
    %v42 = vand.u32 %v41, 127
    %vm43 = vcmp.lt.s32.totalorder %v42, 32
    %vm44 = vcmp.lt.s32.totalorder %v42, 0
    %v45 = vsub.s32 0, %v42
    %v46 = vsel %vm44, %v45, %v42
    %v47 = vshrl.u32 %v46, 4
    %v48 = vand.u32 %v46, 15
    %v49 = vsub.s32 0, %v48
    %v50 = vsel %vm44, %v49, %v48
    %vm51 = vcmp.ne.s32.totalorder %v50, 0
    %vm52 = vcmp.lt.s32.totalorder %v50, 0
    %vm53 = vmand %vm52, %vm51
    %v54 = vadd.s32 %v50, 16
    %v55 = vsel %vm53, %v54, %v50
    %v56 = vsel %vm43, %v55, 4294967275
    %v57 = vadd.s32 %v56, 4294967294
    %vm58 = vcmp.ge.s32.totalorder %v57, 0
    %vm59 = vcmp.lt.s32.totalorder %v57, 16
    %vm60 = vmand %vm58, %vm59
    %v61 = vadd.s32 %v56, 4294967295
    %vm62 = vcmp.ge.s32.totalorder %v61, 0
    %vm63 = vcmp.lt.s32.totalorder %v61, 16
    %vm64 = vmand %vm62, %vm63
    %v65 = vadd.s32 %v56, 1
    %vm66 = vcmp.ge.s32.totalorder %v65, 0
    %vm67 = vcmp.lt.s32.totalorder %v65, 16
    %vm68 = vmand %vm66, %vm67
    %v69 = vadd.s32 %v56, 2
    %vm70 = vcmp.ge.s32.totalorder %v69, 0
    %vm71 = vcmp.lt.s32.totalorder %v69, 16
    %vm72 = vmand %vm70, %vm71
    %v73 = vld [vmem:[%s0] sm:$0xff]
    %75 = vrot.lane.b32.xlu0 %v73, 2
    %v76 = vpop.permute.xlu0 %75
    %v78 = vsel %vm60, 1, 0
    %vm79 = vcmp.eq.s32.totalorder %v78, 1
    %v80 = vsel %vm79, %v76, 0.0
    %v81 = vld [vmem:[#allocation2] sm:$0xff]
    %82 = vrot.lane.b32.xlu0 %v73, 1
    %v83 = vpop.permute.xlu0 %82
    %v85 = vsel %vm64, 1, 0
    %vm86 = vcmp.eq.s32.totalorder %v85, 1
    %v87 = vsel %vm86, %v83, 0.0
    %s88 = scalar_lea.vmem [#allocation2], 8
    %v89 = vld [vmem:[%s88] sm:$0xff]
    %vm90 = vcmask 64512
    %v92 = vsel %vm90, %v89, 0
    %94 = vmatprep.subr.mxu0 0.0
    %95 = vmatpush1.msra.mxu0 %v87
    %96 = vmatprep.subr.mxu0 0.0
    %97 = vmatpush1.msra.mxu0 0.0
    %98 = vmatprep.subr.mxu0 0.0
    %99 = vmatpush1.msra.mxu0 0.0
    %100 = vmatprep.subr.mxu0 0.0
    %101 = vmatpush1.msra.mxu0 0.0
    %102 = vmatprep.subr.mxu0 0.0
    %103 = vmatpush1.msra.mxu0 0.0
    %104 = vmatprep.subr.mxu0 0.0
    %105 = vmatpush1.msra.mxu0 0.0
    %106 = vmatprep.subr.mxu0 0.0
    %107 = vmatpush1.msra.mxu0 0.0
    %108 = vmatprep.subr.mxu0 0.0
    %109 = vmatpush1.msra.mxu0 0.0
    %110 = vmatprep.subr.mxu0 0.0
    %111 = vmatpush1.msra.mxu0 0.0
    %112 = vmatprep.subr.mxu0 0.0
    %113 = vmatpush1.msra.mxu0 0.0
    %114 = vmatprep.subr.mxu0 0.0
    %115 = vmatpush1.msra.mxu0 0.0
    %116 = vmatprep.subr.mxu0 0.0
    %117 = vmatpush1.msra.mxu0 0.0
    %118 = vmatprep.subr.mxu0 0.0
    %119 = vmatpush1.msra.mxu0 0.0
    %120 = vmatprep.subr.mxu0 0.0
    %121 = vmatpush1.msra.mxu0 0.0
    %122 = vmatprep.subr.mxu0 0.0
    %123 = vmatpush1.msra.mxu0 0.0
    %124 = vmatprep.subr.mxu0 0.0
    %125 = vmatpush1.msra.mxu0 0.0
    %126 = vmatprep.subr.mxu0 0.0
    %127 = vmatpush1.msra.mxu0 0.0
    %128 = vmatprep.subr.mxu0 0.0
    %129 = vmatpush1.msra.mxu0 0.0
    %130 = vmatprep.subr.mxu0 0.0
    %131 = vmatpush1.msra.mxu0 0.0
    %132 = vmatprep.subr.mxu0 0.0
    %133 = vmatpush1.msra.mxu0 0.0
    %134 = vmatprep.subr.mxu0 0.0
    %135 = vmatpush1.msra.mxu0 0.0
    %136 = vmatprep.subr.mxu0 0.0
    %137 = vmatpush1.msra.mxu0 0.0
    %138 = vmatprep.subr.mxu0 0.0
    %139 = vmatpush1.msra.mxu0 0.0
    %140 = vmatprep.subr.mxu0 0.0
    %141 = vmatpush1.msra.mxu0 0.0
    %142 = vmatprep.subr.mxu0 0.0
    %143 = vmatpush1.msra.mxu0 0.0
    %144 = vmatprep.subr.mxu0 0.0
    %145 = vmatpush1.msra.mxu0 0.0
    %146 = vmatprep.subr.mxu0 0.0
    %147 = vmatpush1.msra.mxu0 0.0
    %148 = vmatprep.subr.mxu0 0.0
    %149 = vmatpush1.msra.mxu0 0.0
    %150 = vmatprep.subr.mxu0 0.0
    %151 = vmatpush1.msra.mxu0 0.0
    %152 = vmatprep.subr.mxu0 0.0
    %153 = vmatpush1.msra.mxu0 0.0
    %154 = vmatprep.subr.mxu0 0.0
    %155 = vmatpush1.msra.mxu0 0.0
    %156 = vmatprep.subr.mxu0 0.0
    %157 = vmatpush1.msra.mxu0 0.0
    %158 = vmatprep.mubr.f32.mxu0 0.0
    %159 = vmatmul.mubr.f32.gmra.mrb[0].mxu0 %v92
    %v160 = vpop.f32.mrb[0].mxu0
    %v161 = vadd.f32 0.0, %v160
    %v162 = vpop.f32.mrb[0].mxu0
    %163 = vdwg.mxu0
    %v165 = vsel %vm90, %v81, 0
    %167 = vmatprep.subr.mxu0 0.0
    %168 = vmatpush1.msra.mxu0 %v80
    %169 = vmatprep.subr.mxu0 0.0
    %170 = vmatpush1.msra.mxu0 0.0
    %171 = vmatprep.subr.mxu0 0.0
    %172 = vmatpush1.msra.mxu0 0.0
    %173 = vmatprep.subr.mxu0 0.0
    %174 = vmatpush1.msra.mxu0 0.0
    %175 = vmatprep.subr.mxu0 0.0
    %176 = vmatpush1.msra.mxu0 0.0
    %177 = vmatprep.subr.mxu0 0.0
    %178 = vmatpush1.msra.mxu0 0.0
    %179 = vmatprep.subr.mxu0 0.0
    %180 = vmatpush1.msra.mxu0 0.0
    %181 = vmatprep.subr.mxu0 0.0
    %182 = vmatpush1.msra.mxu0 0.0
    %183 = vmatprep.subr.mxu0 0.0
    %184 = vmatpush1.msra.mxu0 0.0
    %185 = vmatprep.subr.mxu0 0.0
    %186 = vmatpush1.msra.mxu0 0.0
    %187 = vmatprep.subr.mxu0 0.0
    %188 = vmatpush1.msra.mxu0 0.0
    %189 = vmatprep.subr.mxu0 0.0
    %190 = vmatpush1.msra.mxu0 0.0
    %191 = vmatprep.subr.mxu0 0.0
    %192 = vmatpush1.msra.mxu0 0.0
    %193 = vmatprep.subr.mxu0 0.0
    %194 = vmatpush1.msra.mxu0 0.0
    %195 = vmatprep.subr.mxu0 0.0
    %196 = vmatpush1.msra.mxu0 0.0
    %197 = vmatprep.subr.mxu0 0.0
    %198 = vmatpush1.msra.mxu0 0.0
    %199 = vmatprep.subr.mxu0 0.0
    %200 = vmatpush1.msra.mxu0 0.0
    %201 = vmatprep.subr.mxu0 0.0
    %202 = vmatpush1.msra.mxu0 0.0
    %203 = vmatprep.subr.mxu0 0.0
    %204 = vmatpush1.msra.mxu0 0.0
    %205 = vmatprep.subr.mxu0 0.0
    %206 = vmatpush1.msra.mxu0 0.0
    %207 = vmatprep.subr.mxu0 0.0
    %208 = vmatpush1.msra.mxu0 0.0
    %209 = vmatprep.subr.mxu0 0.0
    %210 = vmatpush1.msra.mxu0 0.0
    %211 = vmatprep.subr.mxu0 0.0
    %212 = vmatpush1.msra.mxu0 0.0
    %213 = vmatprep.subr.mxu0 0.0
    %214 = vmatpush1.msra.mxu0 0.0
    %215 = vmatprep.subr.mxu0 0.0
    %216 = vmatpush1.msra.mxu0 0.0
    %217 = vmatprep.subr.mxu0 0.0
    %218 = vmatpush1.msra.mxu0 0.0
    %219 = vmatprep.subr.mxu0 0.0
    %220 = vmatpush1.msra.mxu0 0.0
    %221 = vmatprep.subr.mxu0 0.0
    %222 = vmatpush1.msra.mxu0 0.0
    %223 = vmatprep.subr.mxu0 0.0
    %224 = vmatpush1.msra.mxu0 0.0
    %225 = vmatprep.subr.mxu0 0.0
    %226 = vmatpush1.msra.mxu0 0.0
    %227 = vmatprep.subr.mxu0 0.0
    %228 = vmatpush1.msra.mxu0 0.0
    %229 = vmatprep.subr.mxu0 0.0
    %230 = vmatpush1.msra.mxu0 0.0
    %231 = vmatprep.mubr.f32.mxu0 0.0
    %232 = vmatmul.mubr.f32.gmra.mrb[0].mxu0 %v165
    %v233 = vpop.f32.mrb[0].mxu0
    %v234 = vadd.f32 %v161, %v233
    %v235 = vpop.f32.mrb[0].mxu0
    %236 = vdwg.mxu0
    %s237 = scalar_lea.vmem [#allocation2], 16
    %v238 = vld [vmem:[%s237] sm:$0xff]
    %v240 = vsel %vm90, %v238, 0
    %242 = vmatprep.subr.mxu0 0.0
    %243 = vmatpush1.msra.mxu0 %v73
    %244 = vmatprep.subr.mxu0 0.0
    %245 = vmatpush1.msra.mxu0 0.0
    %246 = vmatprep.subr.mxu0 0.0
    %247 = vmatpush1.msra.mxu0 0.0
    %248 = vmatprep.subr.mxu0 0.0
    %249 = vmatpush1.msra.mxu0 0.0
    %250 = vmatprep.subr.mxu0 0.0
    %251 = vmatpush1.msra.mxu0 0.0
    %252 = vmatprep.subr.mxu0 0.0
    %253 = vmatpush1.msra.mxu0 0.0
    %254 = vmatprep.subr.mxu0 0.0
    %255 = vmatpush1.msra.mxu0 0.0
    %256 = vmatprep.subr.mxu0 0.0
    %257 = vmatpush1.msra.mxu0 0.0
    %258 = vmatprep.subr.mxu0 0.0
    %259 = vmatpush1.msra.mxu0 0.0
    %260 = vmatprep.subr.mxu0 0.0
    %261 = vmatpush1.msra.mxu0 0.0
    %262 = vmatprep.subr.mxu0 0.0
    %263 = vmatpush1.msra.mxu0 0.0
    %264 = vmatprep.subr.mxu0 0.0
    %265 = vmatpush1.msra.mxu0 0.0
    %266 = vmatprep.subr.mxu0 0.0
    %267 = vmatpush1.msra.mxu0 0.0
    %268 = vmatprep.subr.mxu0 0.0
    %269 = vmatpush1.msra.mxu0 0.0
    %270 = vmatprep.subr.mxu0 0.0
    %271 = vmatpush1.msra.mxu0 0.0
    %272 = vmatprep.subr.mxu0 0.0
    %273 = vmatpush1.msra.mxu0 0.0
    %274 = vmatprep.subr.mxu0 0.0
    %275 = vmatpush1.msra.mxu0 0.0
    %276 = vmatprep.subr.mxu0 0.0
    %277 = vmatpush1.msra.mxu0 0.0
    %278 = vmatprep.subr.mxu0 0.0
    %279 = vmatpush1.msra.mxu0 0.0
    %280 = vmatprep.subr.mxu0 0.0
    %281 = vmatpush1.msra.mxu0 0.0
    %282 = vmatprep.subr.mxu0 0.0
    %283 = vmatpush1.msra.mxu0 0.0
    %284 = vmatprep.subr.mxu0 0.0
    %285 = vmatpush1.msra.mxu0 0.0
    %286 = vmatprep.subr.mxu0 0.0
    %287 = vmatpush1.msra.mxu0 0.0
    %288 = vmatprep.subr.mxu0 0.0
    %289 = vmatpush1.msra.mxu0 0.0
    %290 = vmatprep.subr.mxu0 0.0
    %291 = vmatpush1.msra.mxu0 0.0
    %292 = vmatprep.subr.mxu0 0.0
    %293 = vmatpush1.msra.mxu0 0.0
    %294 = vmatprep.subr.mxu0 0.0
    %295 = vmatpush1.msra.mxu0 0.0
    %296 = vmatprep.subr.mxu0 0.0
    %297 = vmatpush1.msra.mxu0 0.0
    %298 = vmatprep.subr.mxu0 0.0
    %299 = vmatpush1.msra.mxu0 0.0
    %300 = vmatprep.subr.mxu0 0.0
    %301 = vmatpush1.msra.mxu0 0.0
    %302 = vmatprep.subr.mxu0 0.0
    %303 = vmatpush1.msra.mxu0 0.0
    %304 = vmatprep.subr.mxu0 0.0
    %305 = vmatpush1.msra.mxu0 0.0
    %306 = vmatprep.mubr.f32.mxu0 0.0
    %307 = vmatmul.mubr.f32.gmra.mrb[0].mxu0 %v240
    %v308 = vpop.f32.mrb[0].mxu0
    %v309 = vadd.f32 0.0, %v308
    %v310 = vpop.f32.mrb[0].mxu0
    %311 = vdwg.mxu0
    %v312 = vadd.f32 %v234, %v309
    %313 = vrot.lane.b32.xlu0 %v73, 127
    %v314 = vpop.permute.xlu0 %313
    %v316 = vsel %vm68, 1, 0
    %vm317 = vcmp.eq.s32.totalorder %v316, 1
    %v318 = vsel %vm317, %v314, 0.0
    %s319 = scalar_lea.vmem [#allocation2], 24
    %v320 = vld [vmem:[%s319] sm:$0xff]
    %v322 = vsel %vm90, %v320, 0
    %324 = vmatprep.subr.mxu0 0.0
    %325 = vmatpush1.msra.mxu0 %v318
    %326 = vmatprep.subr.mxu0 0.0
    %327 = vmatpush1.msra.mxu0 0.0
    %328 = vmatprep.subr.mxu0 0.0
    %329 = vmatpush1.msra.mxu0 0.0
    %330 = vmatprep.subr.mxu0 0.0
    %331 = vmatpush1.msra.mxu0 0.0
    %332 = vmatprep.subr.mxu0 0.0
    %333 = vmatpush1.msra.mxu0 0.0
    %334 = vmatprep.subr.mxu0 0.0
    %335 = vmatpush1.msra.mxu0 0.0
    %336 = vmatprep.subr.mxu0 0.0
    %337 = vmatpush1.msra.mxu0 0.0
    %338 = vmatprep.subr.mxu0 0.0
    %339 = vmatpush1.msra.mxu0 0.0
    %340 = vmatprep.subr.mxu0 0.0
    %341 = vmatpush1.msra.mxu0 0.0
    %342 = vmatprep.subr.mxu0 0.0
    %343 = vmatpush1.msra.mxu0 0.0
    %344 = vmatprep.subr.mxu0 0.0
    %345 = vmatpush1.msra.mxu0 0.0
    %346 = vmatprep.subr.mxu0 0.0
    %347 = vmatpush1.msra.mxu0 0.0
    %348 = vmatprep.subr.mxu0 0.0
    %349 = vmatpush1.msra.mxu0 0.0
    %350 = vmatprep.subr.mxu0 0.0
    %351 = vmatpush1.msra.mxu0 0.0
    %352 = vmatprep.subr.mxu0 0.0
    %353 = vmatpush1.msra.mxu0 0.0
    %354 = vmatprep.subr.mxu0 0.0
    %355 = vmatpush1.msra.mxu0 0.0
    %356 = vmatprep.subr.mxu0 0.0
    %357 = vmatpush1.msra.mxu0 0.0
    %358 = vmatprep.subr.mxu0 0.0
    %359 = vmatpush1.msra.mxu0 0.0
    %360 = vmatprep.subr.mxu0 0.0
    %361 = vmatpush1.msra.mxu0 0.0
    %362 = vmatprep.subr.mxu0 0.0
    %363 = vmatpush1.msra.mxu0 0.0
    %364 = vmatprep.subr.mxu0 0.0
    %365 = vmatpush1.msra.mxu0 0.0
    %366 = vmatprep.subr.mxu0 0.0
    %367 = vmatpush1.msra.mxu0 0.0
    %368 = vmatprep.subr.mxu0 0.0
    %369 = vmatpush1.msra.mxu0 0.0
    %370 = vmatprep.subr.mxu0 0.0
    %371 = vmatpush1.msra.mxu0 0.0
    %372 = vmatprep.subr.mxu0 0.0
    %373 = vmatpush1.msra.mxu0 0.0
    %374 = vmatprep.subr.mxu0 0.0
    %375 = vmatpush1.msra.mxu0 0.0
    %376 = vmatprep.subr.mxu0 0.0
    %377 = vmatpush1.msra.mxu0 0.0
    %378 = vmatprep.subr.mxu0 0.0
    %379 = vmatpush1.msra.mxu0 0.0
    %380 = vmatprep.subr.mxu0 0.0
    %381 = vmatpush1.msra.mxu0 0.0
    %382 = vmatprep.subr.mxu0 0.0
    %383 = vmatpush1.msra.mxu0 0.0
    %384 = vmatprep.subr.mxu0 0.0
    %385 = vmatpush1.msra.mxu0 0.0
    %386 = vmatprep.subr.mxu0 0.0
    %387 = vmatpush1.msra.mxu0 0.0
    %388 = vmatprep.mubr.f32.mxu0 0.0
    %389 = vmatmul.mubr.f32.gmra.mrb[0].mxu0 %v322
    %v390 = vpop.f32.mrb[0].mxu0
    %v391 = vadd.f32 0.0, %v390
    %v392 = vpop.f32.mrb[0].mxu0
    %393 = vdwg.mxu0
    %v394 = vadd.f32 %v312, %v391
    %395 = vrot.lane.b32.xlu0 %v73, 126
    %v396 = vpop.permute.xlu0 %395
    %v398 = vsel %vm72, 1, 0
    %vm399 = vcmp.eq.s32.totalorder %v398, 1
    %v400 = vsel %vm399, %v396, 0.0
    %s401 = scalar_lea.vmem [#allocation2], 32
    %v402 = vld [vmem:[%s401] sm:$0xff]
    %v404 = vsel %vm90, %v402, 0
    %406 = vmatprep.subr.mxu0 0.0
    %407 = vmatpush1.msra.mxu0 %v400
    %408 = vmatprep.subr.mxu0 0.0
    %409 = vmatpush1.msra.mxu0 0.0
    %410 = vmatprep.subr.mxu0 0.0
    %411 = vmatpush1.msra.mxu0 0.0
    %412 = vmatprep.subr.mxu0 0.0
    %413 = vmatpush1.msra.mxu0 0.0
    %414 = vmatprep.subr.mxu0 0.0
    %415 = vmatpush1.msra.mxu0 0.0
    %416 = vmatprep.subr.mxu0 0.0
    %417 = vmatpush1.msra.mxu0 0.0
    %418 = vmatprep.subr.mxu0 0.0
    %419 = vmatpush1.msra.mxu0 0.0
    %420 = vmatprep.subr.mxu0 0.0
    %421 = vmatpush1.msra.mxu0 0.0
    %422 = vmatprep.subr.mxu0 0.0
    %423 = vmatpush1.msra.mxu0 0.0
    %424 = vmatprep.subr.mxu0 0.0
    %425 = vmatpush1.msra.mxu0 0.0
    %426 = vmatprep.subr.mxu0 0.0
    %427 = vmatpush1.msra.mxu0 0.0
    %428 = vmatprep.subr.mxu0 0.0
    %429 = vmatpush1.msra.mxu0 0.0
    %430 = vmatprep.subr.mxu0 0.0
    %431 = vmatpush1.msra.mxu0 0.0
    %432 = vmatprep.subr.mxu0 0.0
    %433 = vmatpush1.msra.mxu0 0.0
    %434 = vmatprep.subr.mxu0 0.0
    %435 = vmatpush1.msra.mxu0 0.0
    %436 = vmatprep.subr.mxu0 0.0
    %437 = vmatpush1.msra.mxu0 0.0
    %438 = vmatprep.subr.mxu0 0.0
    %439 = vmatpush1.msra.mxu0 0.0
    %440 = vmatprep.subr.mxu0 0.0
    %441 = vmatpush1.msra.mxu0 0.0
    %442 = vmatprep.subr.mxu0 0.0
    %443 = vmatpush1.msra.mxu0 0.0
    %444 = vmatprep.subr.mxu0 0.0
    %445 = vmatpush1.msra.mxu0 0.0
    %446 = vmatprep.subr.mxu0 0.0
    %447 = vmatpush1.msra.mxu0 0.0
    %448 = vmatprep.subr.mxu0 0.0
    %449 = vmatpush1.msra.mxu0 0.0
    %450 = vmatprep.subr.mxu0 0.0
    %451 = vmatpush1.msra.mxu0 0.0
    %452 = vmatprep.subr.mxu0 0.0
    %453 = vmatpush1.msra.mxu0 0.0
    %454 = vmatprep.subr.mxu0 0.0
    %455 = vmatpush1.msra.mxu0 0.0
    %456 = vmatprep.subr.mxu0 0.0
    %457 = vmatpush1.msra.mxu0 0.0
    %458 = vmatprep.subr.mxu0 0.0
    %459 = vmatpush1.msra.mxu0 0.0
    %460 = vmatprep.subr.mxu0 0.0
    %461 = vmatpush1.msra.mxu0 0.0
    %462 = vmatprep.subr.mxu0 0.0
    %463 = vmatpush1.msra.mxu0 0.0
    %464 = vmatprep.subr.mxu0 0.0
    %465 = vmatpush1.msra.mxu0 0.0
    %466 = vmatprep.subr.mxu0 0.0
    %467 = vmatpush1.msra.mxu0 0.0
    %468 = vmatprep.subr.mxu0 0.0
    %469 = vmatpush1.msra.mxu0 0.0
    %470 = vmatprep.mubr.f32.mxu0 0.0
    %471 = vmatmul.mubr.f32.gmra.mrb[0].mxu0 %v404
    %v472 = vpop.f32.mrb[0].mxu0
    %v473 = vadd.f32 0.0, %v472
    %v474 = vpop.f32.mrb[0].mxu0
    %475 = vdwg.mxu0
    %v476 = vadd.f32 %v394, %v473
    %477 = vadd.xlane.f32.xlu0 %v476
    %v478 = vpop.xlane.xlu0 %477
    %v479 = vmul.f32 %v476, %v476
    %480 = vadd.xlane.f32.xlu0 %v479
    %v481 = vpop.xlane.xlu0 %480
    %v482 = vmul.f32 %v478, 0.03125
    %v483 = vmul.f32 %v481, 0.03125
    %v484 = vmul.f32 %v482, %v482
    %v485 = vsub.f32 %v483, %v484
    %v486 = vld [vmem:[%s2] sm:$0xff]
    %v487 = vadd.f32 %v485, 1e-05
    %v488 = vrsqrt.pop %v487
    %v489 = vmul.f32 %v486, %v488
    %v490 = vld [vmem:[%s3] sm:$0xff]
    %v491 = vmul.f32 %v482, %v489
    %v492 = vsub.f32 %v490, %v491
    %494 = vset.pattern.permute.xlu0 0
    %495 = vperm.xlu0 %494, %v489
    %v496 = vpop.permute.xlu0 %495
    %v498 = vmul.f32 %v476, %v496
    %500 = vset.pattern.permute.xlu0 0
    %501 = vperm.xlu0 %500, %v492
    %v502 = vpop.permute.xlu0 %501
    %v504 = vadd.f32 %v498, %v502
    %v505 = vmax.f32 %v504, 0.0
    %v506 = vsel %vm43, 1, 0
    %vm507 = vcmp.eq.s32.totalorder %v506, 1
    %v508 = vsel %vm507, %v505, 0.0
    %510 = vrot.lane.b32.xlu0 %v508, 2
    %v511 = vpop.permute.xlu0 %510
    %v513 = vsel %vm79, %v511, 0.0
    %v514 = vld [vmem:[%s4] sm:$0xff]
    %515 = vrot.lane.b32.xlu0 %v508, 1
    %v516 = vpop.permute.xlu0 %515
    %v518 = vsel %vm86, %v516, 0.0
    %s519 = scalar_lea.vmem %s4, 8
    %v520 = vld [vmem:[%s519] sm:$0xff]
    %v522 = vsel %vm90, %v520, 0
    %524 = vmatprep.subr.mxu0 0.0
    %525 = vmatpush1.msra.mxu0 %v518
    %526 = vmatprep.subr.mxu0 0.0
    %527 = vmatpush1.msra.mxu0 0.0
    %528 = vmatprep.subr.mxu0 0.0
    %529 = vmatpush1.msra.mxu0 0.0
    %530 = vmatprep.subr.mxu0 0.0
    %531 = vmatpush1.msra.mxu0 0.0
    %532 = vmatprep.subr.mxu0 0.0
    %533 = vmatpush1.msra.mxu0 0.0
    %534 = vmatprep.subr.mxu0 0.0
    %535 = vmatpush1.msra.mxu0 0.0
    %536 = vmatprep.subr.mxu0 0.0
    %537 = vmatpush1.msra.mxu0 0.0
    %538 = vmatprep.subr.mxu0 0.0
    %539 = vmatpush1.msra.mxu0 0.0
    %540 = vmatprep.subr.mxu0 0.0
    %541 = vmatpush1.msra.mxu0 0.0
    %542 = vmatprep.subr.mxu0 0.0
    %543 = vmatpush1.msra.mxu0 0.0
    %544 = vmatprep.subr.mxu0 0.0
    %545 = vmatpush1.msra.mxu0 0.0
    %546 = vmatprep.subr.mxu0 0.0
    %547 = vmatpush1.msra.mxu0 0.0
    %548 = vmatprep.subr.mxu0 0.0
    %549 = vmatpush1.msra.mxu0 0.0
    %550 = vmatprep.subr.mxu0 0.0
    %551 = vmatpush1.msra.mxu0 0.0
    %552 = vmatprep.subr.mxu0 0.0
    %553 = vmatpush1.msra.mxu0 0.0
    %554 = vmatprep.subr.mxu0 0.0
    %555 = vmatpush1.msra.mxu0 0.0
    %556 = vmatprep.subr.mxu0 0.0
    %557 = vmatpush1.msra.mxu0 0.0
    %558 = vmatprep.subr.mxu0 0.0
    %559 = vmatpush1.msra.mxu0 0.0
    %560 = vmatprep.subr.mxu0 0.0
    %561 = vmatpush1.msra.mxu0 0.0
    %562 = vmatprep.subr.mxu0 0.0
    %563 = vmatpush1.msra.mxu0 0.0
    %564 = vmatprep.subr.mxu0 0.0
    %565 = vmatpush1.msra.mxu0 0.0
    %566 = vmatprep.subr.mxu0 0.0
    %567 = vmatpush1.msra.mxu0 0.0
    %568 = vmatprep.subr.mxu0 0.0
    %569 = vmatpush1.msra.mxu0 0.0
    %570 = vmatprep.subr.mxu0 0.0
    %571 = vmatpush1.msra.mxu0 0.0
    %572 = vmatprep.subr.mxu0 0.0
    %573 = vmatpush1.msra.mxu0 0.0
    %574 = vmatprep.subr.mxu0 0.0
    %575 = vmatpush1.msra.mxu0 0.0
    %576 = vmatprep.subr.mxu0 0.0
    %577 = vmatpush1.msra.mxu0 0.0
    %578 = vmatprep.subr.mxu0 0.0
    %579 = vmatpush1.msra.mxu0 0.0
    %580 = vmatprep.subr.mxu0 0.0
    %581 = vmatpush1.msra.mxu0 0.0
    %582 = vmatprep.subr.mxu0 0.0
    %583 = vmatpush1.msra.mxu0 0.0
    %584 = vmatprep.subr.mxu0 0.0
    %585 = vmatpush1.msra.mxu0 0.0
    %586 = vmatprep.subr.mxu0 0.0
    %587 = vmatpush1.msra.mxu0 0.0
    %588 = vmatprep.mubr.f32.mxu0 0.0
    %589 = vmatmul.mubr.f32.gmra.mrb[0].mxu0 %v522
    %v590 = vpop.f32.mrb[0].mxu0
    %v591 = vadd.f32 0.0, %v590
    %v592 = vpop.f32.mrb[0].mxu0
    %593 = vdwg.mxu0
    %v595 = vsel %vm90, %v514, 0
    %597 = vmatprep.subr.mxu0 0.0
    %598 = vmatpush1.msra.mxu0 %v513
    %599 = vmatprep.subr.mxu0 0.0
    %600 = vmatpush1.msra.mxu0 0.0
    %601 = vmatprep.subr.mxu0 0.0
    %602 = vmatpush1.msra.mxu0 0.0
    %603 = vmatprep.subr.mxu0 0.0
    %604 = vmatpush1.msra.mxu0 0.0
    %605 = vmatprep.subr.mxu0 0.0
    %606 = vmatpush1.msra.mxu0 0.0
    %607 = vmatprep.subr.mxu0 0.0
    %608 = vmatpush1.msra.mxu0 0.0
    %609 = vmatprep.subr.mxu0 0.0
    %610 = vmatpush1.msra.mxu0 0.0
    %611 = vmatprep.subr.mxu0 0.0
    %612 = vmatpush1.msra.mxu0 0.0
    %613 = vmatprep.subr.mxu0 0.0
    %614 = vmatpush1.msra.mxu0 0.0
    %615 = vmatprep.subr.mxu0 0.0
    %616 = vmatpush1.msra.mxu0 0.0
    %617 = vmatprep.subr.mxu0 0.0
    %618 = vmatpush1.msra.mxu0 0.0
    %619 = vmatprep.subr.mxu0 0.0
    %620 = vmatpush1.msra.mxu0 0.0
    %621 = vmatprep.subr.mxu0 0.0
    %622 = vmatpush1.msra.mxu0 0.0
    %623 = vmatprep.subr.mxu0 0.0
    %624 = vmatpush1.msra.mxu0 0.0
    %625 = vmatprep.subr.mxu0 0.0
    %626 = vmatpush1.msra.mxu0 0.0
    %627 = vmatprep.subr.mxu0 0.0
    %628 = vmatpush1.msra.mxu0 0.0
    %629 = vmatprep.subr.mxu0 0.0
    %630 = vmatpush1.msra.mxu0 0.0
    %631 = vmatprep.subr.mxu0 0.0
    %632 = vmatpush1.msra.mxu0 0.0
    %633 = vmatprep.subr.mxu0 0.0
    %634 = vmatpush1.msra.mxu0 0.0
    %635 = vmatprep.subr.mxu0 0.0
    %636 = vmatpush1.msra.mxu0 0.0
    %637 = vmatprep.subr.mxu0 0.0
    %638 = vmatpush1.msra.mxu0 0.0
    %639 = vmatprep.subr.mxu0 0.0
    %640 = vmatpush1.msra.mxu0 0.0
    %641 = vmatprep.subr.mxu0 0.0
    %642 = vmatpush1.msra.mxu0 0.0
    %643 = vmatprep.subr.mxu0 0.0
    %644 = vmatpush1.msra.mxu0 0.0
    %645 = vmatprep.subr.mxu0 0.0
    %646 = vmatpush1.msra.mxu0 0.0
    %647 = vmatprep.subr.mxu0 0.0
    %648 = vmatpush1.msra.mxu0 0.0
    %649 = vmatprep.subr.mxu0 0.0
    %650 = vmatpush1.msra.mxu0 0.0
    %651 = vmatprep.subr.mxu0 0.0
    %652 = vmatpush1.msra.mxu0 0.0
    %653 = vmatprep.subr.mxu0 0.0
    %654 = vmatpush1.msra.mxu0 0.0
    %655 = vmatprep.subr.mxu0 0.0
    %656 = vmatpush1.msra.mxu0 0.0
    %657 = vmatprep.subr.mxu0 0.0
    %658 = vmatpush1.msra.mxu0 0.0
    %659 = vmatprep.subr.mxu0 0.0
    %660 = vmatpush1.msra.mxu0 0.0
    %661 = vmatprep.mubr.f32.mxu0 0.0
    %662 = vmatmul.mubr.f32.gmra.mrb[0].mxu0 %v595
    %v663 = vpop.f32.mrb[0].mxu0
    %v664 = vadd.f32 %v591, %v663
    %v665 = vpop.f32.mrb[0].mxu0
    %666 = vdwg.mxu0
    %s667 = scalar_lea.vmem %s4, 16
    %v668 = vld [vmem:[%s667] sm:$0xff]
    %v670 = vsel %vm90, %v668, 0
    %672 = vmatprep.subr.mxu0 0.0
    %673 = vmatpush1.msra.mxu0 %v508
    %674 = vmatprep.subr.mxu0 0.0
    %675 = vmatpush1.msra.mxu0 0.0
    %676 = vmatprep.subr.mxu0 0.0
    %677 = vmatpush1.msra.mxu0 0.0
    %678 = vmatprep.subr.mxu0 0.0
    %679 = vmatpush1.msra.mxu0 0.0
    %680 = vmatprep.subr.mxu0 0.0
    %681 = vmatpush1.msra.mxu0 0.0
    %682 = vmatprep.subr.mxu0 0.0
    %683 = vmatpush1.msra.mxu0 0.0
    %684 = vmatprep.subr.mxu0 0.0
    %685 = vmatpush1.msra.mxu0 0.0
    %686 = vmatprep.subr.mxu0 0.0
    %687 = vmatpush1.msra.mxu0 0.0
    %688 = vmatprep.subr.mxu0 0.0
    %689 = vmatpush1.msra.mxu0 0.0
    %690 = vmatprep.subr.mxu0 0.0
    %691 = vmatpush1.msra.mxu0 0.0
    %692 = vmatprep.subr.mxu0 0.0
    %693 = vmatpush1.msra.mxu0 0.0
    %694 = vmatprep.subr.mxu0 0.0
    %695 = vmatpush1.msra.mxu0 0.0
    %696 = vmatprep.subr.mxu0 0.0
    %697 = vmatpush1.msra.mxu0 0.0
    %698 = vmatprep.subr.mxu0 0.0
    %699 = vmatpush1.msra.mxu0 0.0
    %700 = vmatprep.subr.mxu0 0.0
    %701 = vmatpush1.msra.mxu0 0.0
    %702 = vmatprep.subr.mxu0 0.0
    %703 = vmatpush1.msra.mxu0 0.0
    %704 = vmatprep.subr.mxu0 0.0
    %705 = vmatpush1.msra.mxu0 0.0
    %706 = vmatprep.subr.mxu0 0.0
    %707 = vmatpush1.msra.mxu0 0.0
    %708 = vmatprep.subr.mxu0 0.0
    %709 = vmatpush1.msra.mxu0 0.0
    %710 = vmatprep.subr.mxu0 0.0
    %711 = vmatpush1.msra.mxu0 0.0
    %712 = vmatprep.subr.mxu0 0.0
    %713 = vmatpush1.msra.mxu0 0.0
    %714 = vmatprep.subr.mxu0 0.0
    %715 = vmatpush1.msra.mxu0 0.0
    %716 = vmatprep.subr.mxu0 0.0
    %717 = vmatpush1.msra.mxu0 0.0
    %718 = vmatprep.subr.mxu0 0.0
    %719 = vmatpush1.msra.mxu0 0.0
    %720 = vmatprep.subr.mxu0 0.0
    %721 = vmatpush1.msra.mxu0 0.0
    %722 = vmatprep.subr.mxu0 0.0
    %723 = vmatpush1.msra.mxu0 0.0
    %724 = vmatprep.subr.mxu0 0.0
    %725 = vmatpush1.msra.mxu0 0.0
    %726 = vmatprep.subr.mxu0 0.0
    %727 = vmatpush1.msra.mxu0 0.0
    %728 = vmatprep.subr.mxu0 0.0
    %729 = vmatpush1.msra.mxu0 0.0
    %730 = vmatprep.subr.mxu0 0.0
    %731 = vmatpush1.msra.mxu0 0.0
    %732 = vmatprep.subr.mxu0 0.0
    %733 = vmatpush1.msra.mxu0 0.0
    %734 = vmatprep.subr.mxu0 0.0
    %735 = vmatpush1.msra.mxu0 0.0
    %736 = vmatprep.mubr.f32.mxu0 0.0
    %737 = vmatmul.mubr.f32.gmra.mrb[0].mxu0 %v670
    %v738 = vpop.f32.mrb[0].mxu0
    %v739 = vadd.f32 0.0, %v738
    %v740 = vpop.f32.mrb[0].mxu0
    %741 = vdwg.mxu0
    %v742 = vadd.f32 %v664, %v739
    %743 = vrot.lane.b32.xlu0 %v508, 127
    %v744 = vpop.permute.xlu0 %743
    %v746 = vsel %vm317, %v744, 0.0
    %s747 = scalar_lea.vmem %s4, 24
    %v748 = vld [vmem:[%s747] sm:$0xff]
    %v750 = vsel %vm90, %v748, 0
    %752 = vmatprep.subr.mxu0 0.0
    %753 = vmatpush1.msra.mxu0 %v746
    %754 = vmatprep.subr.mxu0 0.0
    %755 = vmatpush1.msra.mxu0 0.0
    %756 = vmatprep.subr.mxu0 0.0
    %757 = vmatpush1.msra.mxu0 0.0
    %758 = vmatprep.subr.mxu0 0.0
    %759 = vmatpush1.msra.mxu0 0.0
    %760 = vmatprep.subr.mxu0 0.0
    %761 = vmatpush1.msra.mxu0 0.0
    %762 = vmatprep.subr.mxu0 0.0
    %763 = vmatpush1.msra.mxu0 0.0
    %764 = vmatprep.subr.mxu0 0.0
    %765 = vmatpush1.msra.mxu0 0.0
    %766 = vmatprep.subr.mxu0 0.0
    %767 = vmatpush1.msra.mxu0 0.0
    %768 = vmatprep.subr.mxu0 0.0
    %769 = vmatpush1.msra.mxu0 0.0
    %770 = vmatprep.subr.mxu0 0.0
    %771 = vmatpush1.msra.mxu0 0.0
    %772 = vmatprep.subr.mxu0 0.0
    %773 = vmatpush1.msra.mxu0 0.0
    %774 = vmatprep.subr.mxu0 0.0
    %775 = vmatpush1.msra.mxu0 0.0
    %776 = vmatprep.subr.mxu0 0.0
    %777 = vmatpush1.msra.mxu0 0.0
    %778 = vmatprep.subr.mxu0 0.0
    %779 = vmatpush1.msra.mxu0 0.0
    %780 = vmatprep.subr.mxu0 0.0
    %781 = vmatpush1.msra.mxu0 0.0
    %782 = vmatprep.subr.mxu0 0.0
    %783 = vmatpush1.msra.mxu0 0.0
    %784 = vmatprep.subr.mxu0 0.0
    %785 = vmatpush1.msra.mxu0 0.0
    %786 = vmatprep.subr.mxu0 0.0
    %787 = vmatpush1.msra.mxu0 0.0
    %788 = vmatprep.subr.mxu0 0.0
    %789 = vmatpush1.msra.mxu0 0.0
    %790 = vmatprep.subr.mxu0 0.0
    %791 = vmatpush1.msra.mxu0 0.0
    %792 = vmatprep.subr.mxu0 0.0
    %793 = vmatpush1.msra.mxu0 0.0
    %794 = vmatprep.subr.mxu0 0.0
    %795 = vmatpush1.msra.mxu0 0.0
    %796 = vmatprep.subr.mxu0 0.0
    %797 = vmatpush1.msra.mxu0 0.0
    %798 = vmatprep.subr.mxu0 0.0
    %799 = vmatpush1.msra.mxu0 0.0
    %800 = vmatprep.subr.mxu0 0.0
    %801 = vmatpush1.msra.mxu0 0.0
    %802 = vmatprep.subr.mxu0 0.0
    %803 = vmatpush1.msra.mxu0 0.0
    %804 = vmatprep.subr.mxu0 0.0
    %805 = vmatpush1.msra.mxu0 0.0
    %806 = vmatprep.subr.mxu0 0.0
    %807 = vmatpush1.msra.mxu0 0.0
    %808 = vmatprep.subr.mxu0 0.0
    %809 = vmatpush1.msra.mxu0 0.0
    %810 = vmatprep.subr.mxu0 0.0
    %811 = vmatpush1.msra.mxu0 0.0
    %812 = vmatprep.subr.mxu0 0.0
    %813 = vmatpush1.msra.mxu0 0.0
    %814 = vmatprep.subr.mxu0 0.0
    %815 = vmatpush1.msra.mxu0 0.0
    %816 = vmatprep.mubr.f32.mxu0 0.0
    %817 = vmatmul.mubr.f32.gmra.mrb[0].mxu0 %v750
    %v818 = vpop.f32.mrb[0].mxu0
    %v819 = vadd.f32 0.0, %v818
    %v820 = vpop.f32.mrb[0].mxu0
    %821 = vdwg.mxu0
    %v822 = vadd.f32 %v742, %v819
    %823 = vrot.lane.b32.xlu0 %v508, 126
    %v824 = vpop.permute.xlu0 %823
    %v826 = vsel %vm399, %v824, 0.0
    %s827 = scalar_lea.vmem %s4, 32
    %v828 = vld [vmem:[%s827] sm:$0xff]
    %v830 = vsel %vm90, %v828, 0
    %832 = vmatprep.subr.mxu0 0.0
    %833 = vmatpush1.msra.mxu0 %v826
    %834 = vmatprep.subr.mxu0 0.0
    %835 = vmatpush1.msra.mxu0 0.0
    %836 = vmatprep.subr.mxu0 0.0
    %837 = vmatpush1.msra.mxu0 0.0
    %838 = vmatprep.subr.mxu0 0.0
    %839 = vmatpush1.msra.mxu0 0.0
    %840 = vmatprep.subr.mxu0 0.0
    %841 = vmatpush1.msra.mxu0 0.0
    %842 = vmatprep.subr.mxu0 0.0
    %843 = vmatpush1.msra.mxu0 0.0
    %844 = vmatprep.subr.mxu0 0.0
    %845 = vmatpush1.msra.mxu0 0.0
    %846 = vmatprep.subr.mxu0 0.0
    %847 = vmatpush1.msra.mxu0 0.0
    %848 = vmatprep.subr.mxu0 0.0
    %849 = vmatpush1.msra.mxu0 0.0
    %850 = vmatprep.subr.mxu0 0.0
    %851 = vmatpush1.msra.mxu0 0.0
    %852 = vmatprep.subr.mxu0 0.0
    %853 = vmatpush1.msra.mxu0 0.0
    %854 = vmatprep.subr.mxu0 0.0
    %855 = vmatpush1.msra.mxu0 0.0
    %856 = vmatprep.subr.mxu0 0.0
    %857 = vmatpush1.msra.mxu0 0.0
    %858 = vmatprep.subr.mxu0 0.0
    %859 = vmatpush1.msra.mxu0 0.0
    %860 = vmatprep.subr.mxu0 0.0
    %861 = vmatpush1.msra.mxu0 0.0
    %862 = vmatprep.subr.mxu0 0.0
    %863 = vmatpush1.msra.mxu0 0.0
    %864 = vmatprep.subr.mxu0 0.0
    %865 = vmatpush1.msra.mxu0 0.0
    %866 = vmatprep.subr.mxu0 0.0
    %867 = vmatpush1.msra.mxu0 0.0
    %868 = vmatprep.subr.mxu0 0.0
    %869 = vmatpush1.msra.mxu0 0.0
    %870 = vmatprep.subr.mxu0 0.0
    %871 = vmatpush1.msra.mxu0 0.0
    %872 = vmatprep.subr.mxu0 0.0
    %873 = vmatpush1.msra.mxu0 0.0
    %874 = vmatprep.subr.mxu0 0.0
    %875 = vmatpush1.msra.mxu0 0.0
    %876 = vmatprep.subr.mxu0 0.0
    %877 = vmatpush1.msra.mxu0 0.0
    %878 = vmatprep.subr.mxu0 0.0
    %879 = vmatpush1.msra.mxu0 0.0
    %880 = vmatprep.subr.mxu0 0.0
    %881 = vmatpush1.msra.mxu0 0.0
    %882 = vmatprep.subr.mxu0 0.0
    %883 = vmatpush1.msra.mxu0 0.0
    %884 = vmatprep.subr.mxu0 0.0
    %885 = vmatpush1.msra.mxu0 0.0
    %886 = vmatprep.subr.mxu0 0.0
    %887 = vmatpush1.msra.mxu0 0.0
    %888 = vmatprep.subr.mxu0 0.0
    %889 = vmatpush1.msra.mxu0 0.0
    %890 = vmatprep.subr.mxu0 0.0
    %891 = vmatpush1.msra.mxu0 0.0
    %892 = vmatprep.subr.mxu0 0.0
    %893 = vmatpush1.msra.mxu0 0.0
    %894 = vmatprep.subr.mxu0 0.0
    %895 = vmatpush1.msra.mxu0 0.0
    %896 = vmatprep.mubr.f32.mxu0 0.0
    %897 = vmatmul.mubr.f32.gmra.mrb[0].mxu0 %v830
    %v898 = vpop.f32.mrb[0].mxu0
    %v899 = vadd.f32 0.0, %v898
    %v900 = vpop.f32.mrb[0].mxu0
    %901 = vdwg.mxu0
    %v902 = vadd.f32 %v822, %v899
    %903 = vadd.xlane.f32.xlu0 %v902
    %v904 = vpop.xlane.xlu0 %903
    %v905 = vmul.f32 %v902, %v902
    %906 = vadd.xlane.f32.xlu0 %v905
    %v907 = vpop.xlane.xlu0 %906
    %v908 = vmul.f32 %v904, 0.03125
    %v909 = vmul.f32 %v907, 0.03125
    %v910 = vmul.f32 %v908, %v908
    %v911 = vsub.f32 %v909, %v910
    %v912 = vld [vmem:[%s5] sm:$0xff]
    %v913 = vadd.f32 %v911, 1e-05
    %v914 = vrsqrt.pop %v913
    %v915 = vmul.f32 %v912, %v914
    %v916 = vld [vmem:[%s6] sm:$0xff]
    %v917 = vmul.f32 %v908, %v915
    %v918 = vsub.f32 %v916, %v917
    %920 = vset.pattern.permute.xlu0 0
    %921 = vperm.xlu0 %920, %v915
    %v922 = vpop.permute.xlu0 %921
    %v924 = vmul.f32 %v902, %v922
    %926 = vset.pattern.permute.xlu0 0
    %927 = vperm.xlu0 %926, %v918
    %v928 = vpop.permute.xlu0 %927
    %v930 = vadd.f32 %v924, %v928
    %931 = vst [vmem:[#allocation5] sm:$0xff] %v930
    // Predicated region
    $region34: #{tpu_custom_call.1} parent=1 // pred_check
      _
    $region35: #{tpu_custom_call.1} parent=1 // pred_check_branch
      %933 = sbr.rel (0) target = $region37
    $region36: #{tpu_custom_call.1} parent=1 // pred_region
      %s935 = ssub.s32 128, 128
      %936 = vsyncadd [#allocation4], %s935
      %s938 = sshll.u32 [#allocation5], 4
      %s939 = int_to_ptr.vmem [resolvable:$true] %s938
      %941 = dma.vmem_to_hbm [thread:$0]  %s939, 128, %s7, [#allocation4]
    $region37: #{tpu_custom_call.1} parent=1 // pred_fallthru
      _
    // Predicated region
    $region38: #{tpu_custom_call.1} parent=1 // pred_check
      _
    $region39: #{tpu_custom_call.1} parent=1 // pred_check_branch
      %943 = sbr.rel (0) target = $region41
    $region40: #{tpu_custom_call.1} parent=1 // pred_region
      %944 = dma.done [#allocation4], 128
    $region41: #{tpu_custom_call.1} parent=1 // pred_fallthru
      _
    %945 = vsyncpa [#allocation3], 1
    %946 = vsyncpa [#allocation4], 1

</llo_original>
